<compile_context>
chip_gen: v5e
topology: v5e:2x2
jax: 0.10.0
libtpu: 0.0.40
codegen_flags: <defaults>
</compile_context>

<pallas_src>
import math
import functools

import jax
import jax.numpy as jnp
from jax.experimental import pallas as pl
from jax.experimental.pallas import tpu as pltpu


def _conv_attn_kernel(x_ref, cw_ref, cb_ref, wqkv_ref, bqkv_ref,
                      wo_ref, bo_ref, out_ref, *, K):
    # x_ref: (TB, L, C)  -- C already on the lane axis
    TB, L, C = x_ref.shape
    T = L - K + 1

    x = x_ref[...].astype(jnp.float32)

    # ---- depthwise Conv1d (groups == C), no padding, output directly (TB, T, C) ----
    y = jnp.broadcast_to(cb_ref[...], (TB, T, C)).astype(jnp.float32)
    for k in range(K):                       # K is small & static: unrolled
        y = y + cw_ref[k, :].astype(jnp.float32) * x[:, k:k + T, :]

    # ---- fused QKV projection: one (TB*T, C) @ (C, 3C) MXU pass ----
    a2 = y.reshape(TB * T, C)
    qkv = jnp.dot(a2, wqkv_ref[...], preferred_element_type=jnp.float32) + bqkv_ref[...]
    q = qkv[:, 0 * C:1 * C].reshape(TB, T, C)
    k_ = qkv[:, 1 * C:2 * C].reshape(TB, T, C)
    v = qkv[:, 2 * C:3 * C].reshape(TB, T, C)

    # ---- sigmoid attention, batched over the TB tile (no in-kernel transposes) ----
    scores = jnp.einsum("btc,bsc->bts", q, k_,
                        preferred_element_type=jnp.float32) * (1.0 / math.sqrt(C))
    scores = jax.nn.sigmoid(scores)                                   # (TB, T, T)
    attn = jnp.einsum("bts,bsc->btc", scores, v,
                      preferred_element_type=jnp.float32)             # (TB, T, C)

    # ---- output projection (weight already transposed in the wrapper) ----
    o = jnp.dot(attn.reshape(TB * T, C), wo_ref[...],
                preferred_element_type=jnp.float32) + bo_ref[...]
    o = o.reshape(TB, T, C)

    # ---- AdaptiveAvgPool1d(1) over T + ReLU, lane-dense (TB, C) store ----
    pooled = jnp.sum(o, axis=1) * (1.0 / T)
    out_ref[...] = jnp.maximum(pooled, 0.0).astype(out_ref.dtype)


def conv_attention_block(x, params, K, *, batch_tile=8):
    """x: (B, C, L) float32.  Returns (B, C, 1) float32."""
    B, C, L = x.shape
    TB = min(batch_tile, B)
    padded_B = ((B + TB - 1) // TB) * TB

    # One-time layout work hoisted out of the kernel (amortized over the batch).
    x_nlc = jnp.transpose(x, (0, 2, 1))                               # (B, L, C)
    if padded_B != B:
        x_nlc = jnp.pad(x_nlc, ((0, padded_B - B), (0, 0), (0, 0)))

    cw = jnp.transpose(params["conv_w"].reshape(C, K))                # (K, C)
    cb = params["conv_b"].reshape(1, C)
    # fused, pre-transposed QKV weight / bias and transposed output weight
    wqkv = jnp.concatenate(
        [params["wq"].T, params["wk"].T, params["wv"].T], axis=1)     # (C, 3C)
    bqkv = jnp.concatenate(
        [params["bq"], params["bk"], params["bv"]]).reshape(1, 3 * C)
    wo_t = params["wo"].T                                             # (C, C)
    bo = params["bo"].reshape(1, C)

    bcast = lambda shape: pl.BlockSpec(shape, lambda b: (0,) * len(shape))
    kernel = functools.partial(_conv_attn_kernel, K=K)

    out = pl.pallas_call(
        kernel,
        out_shape=jax.ShapeDtypeStruct((padded_B, C), jnp.float32),
        grid_spec=pltpu.PrefetchScalarGridSpec(
            num_scalar_prefetch=0,
            grid=(padded_B // TB,),
            in_specs=[
                pl.BlockSpec((TB, L, C), lambda b: (b, 0, 0)),        # x tile
                bcast((K, C)),                                        # conv weight
                bcast((1, C)),                                        # conv bias
                bcast((C, 3 * C)),                                    # fused Wqkv^T
                bcast((1, 3 * C)),                                    # fused bqkv
                bcast((C, C)),                                        # Wo^T
                bcast((1, C)),                                        # bo
            ],
            out_specs=pl.BlockSpec((TB, C), lambda b: (b, 0)),        # lane-dense out
        ),
        compiler_params=pltpu.CompilerParams(
            dimension_semantics=("parallel",)),
    )(x_nlc, cw, cb, wqkv, bqkv, wo_t, bo)

    return out[:B].reshape(B, C, 1)


def _reference(x, params, K):
    """Pure-JAX reference of the PyTorch forward (for verification)."""
    B, C, L = x.shape
    T = L - K + 1
    cw = params["conv_w"].reshape(C, K)
    y = params["conv_b"].reshape(1, C, 1) * jnp.ones((B, C, T))
    for k in range(K):
        y = y + cw[None, :, k:k + 1] * x[:, :, k:k + T]
    a = jnp.transpose(y, (0, 2, 1))                                   # (B, T, C)
    lin = lambda t, w, b: jnp.einsum("btc,dc->btd", t, w) + b
    q = lin(a, params["wq"], params["bq"])
    k_ = lin(a, params["wk"], params["bk"])
    v = lin(a, params["wv"], params["bv"])
    s = jax.nn.sigmoid(jnp.einsum("btc,bsc->bts", q, k_) / math.sqrt(C))
    o = lin(jnp.einsum("bts,bsc->btc", s, v), params["wo"], params["bo"])
    pooled = jnp.mean(jnp.transpose(o, (0, 2, 1)), axis=-1, keepdims=True)
    return jnp.maximum(pooled, 0.0)


if __name__ == "__main__":
    B, C, L, K = 2, 4, 16, 3
    key = jax.random.PRNGKey(0)
    keys = jax.random.split(key, 11)

    params = {
        "conv_w": jax.random.normal(keys[0], (C, 1, K), jnp.float32) * 0.3,
        "conv_b": jax.random.normal(keys[1], (C,), jnp.float32) * 0.1,
        "wq": jax.random.normal(keys[2], (C, C), jnp.float32) * 0.3,
        "bq": jax.random.normal(keys[3], (C,), jnp.float32) * 0.1,
        "wk": jax.random.normal(keys[4], (C, C), jnp.float32) * 0.3,
        "bk": jax.random.normal(keys[5], (C,), jnp.float32) * 0.1,
        "wv": jax.random.normal(keys[6], (C, C), jnp.float32) * 0.3,
        "bv": jax.random.normal(keys[7], (C,), jnp.float32) * 0.1,
        "wo": jax.random.normal(keys[8], (C, C), jnp.float32) * 0.3,
        "bo": jax.random.normal(keys[9], (C,), jnp.float32) * 0.1,
    }
    x = jax.random.normal(keys[10], (B, C, L), jnp.float32)

    out = conv_attention_block(x, params, K)
    out = jax.block_until_ready(out)

    ref = _reference(x, params, K)
    assert out.shape == (B, C, 1), out.shape
    assert jnp.allclose(out, ref, atol=1e-4, rtol=1e-4), (out, ref)
    print("KERNEL_OK")
</pallas_src>

<mosaic_0001>
module attributes {stable_mosaic.version = 11 : i64} {
  func.func @_conv_attn_kernel(%arg0: i32, %arg1: memref<2x16x4xf32, #tpu.memory_space<vmem>>, %arg2: memref<3x4xf32, #tpu.memory_space<vmem>>, %arg3: memref<1x4xf32, #tpu.memory_space<vmem>>, %arg4: memref<4x12xf32, #tpu.memory_space<vmem>>, %arg5: memref<1x12xf32, #tpu.memory_space<vmem>>, %arg6: memref<4x4xf32, #tpu.memory_space<vmem>>, %arg7: memref<1x4xf32, #tpu.memory_space<vmem>>, %arg8: memref<2x4xf32, #tpu.memory_space<vmem>>) attributes {dimension_semantics = [#tpu.dimension_semantics<parallel>], iteration_bounds = array<i64: 1>, scalar_prefetch = 0 : i64, scratch_operands = 0 : i64, tpu.core_type = #tpu.core_type<tc>, window_params = [{transform_indices = @transform_0, window_bounds = array<i64: 2, 16, 4>}, {pipeline_mode = #tpu.pipeline_mode<synchronous>, transform_indices = @transform_1, window_bounds = array<i64: 3, 4>}, {pipeline_mode = #tpu.pipeline_mode<synchronous>, transform_indices = @transform_2, window_bounds = array<i64: 1, 4>}, {pipeline_mode = #tpu.pipeline_mode<synchronous>, transform_indices = @transform_3, window_bounds = array<i64: 4, 12>}, {pipeline_mode = #tpu.pipeline_mode<synchronous>, transform_indices = @transform_4, window_bounds = array<i64: 1, 12>}, {pipeline_mode = #tpu.pipeline_mode<synchronous>, transform_indices = @transform_5, window_bounds = array<i64: 4, 4>}, {pipeline_mode = #tpu.pipeline_mode<synchronous>, transform_indices = @transform_6, window_bounds = array<i64: 1, 4>}, {transform_indices = @transform_7, window_bounds = array<i64: 2, 4>}]} {
    %c0 = arith.constant 0 : index
    %c0_0 = arith.constant 0 : index
    %c0_1 = arith.constant 0 : index
    %0 = vector.load %arg1[%c0, %c0_0, %c0_1] : memref<2x16x4xf32, #tpu.memory_space<vmem>>, vector<2x16x4xf32>
    %c0_2 = arith.constant 0 : index
    %c0_3 = arith.constant 0 : index
    %1 = vector.load %arg3[%c0_2, %c0_3] : memref<1x4xf32, #tpu.memory_space<vmem>>, vector<1x4xf32>
    %2 = vector.shape_cast %1 : vector<1x4xf32> to vector<1x1x4xf32>
    %3 = vector.broadcast %2 : vector<1x1x4xf32> to vector<2x14x4xf32>
    %c0_4 = arith.constant 0 : index
    %c0_5 = arith.constant 0 : index
    %4 = vector.load %arg2[%c0_4, %c0_5] : memref<3x4xf32, #tpu.memory_space<vmem>>, vector<1x4xf32>
    %5 = vector.shape_cast %4 : vector<1x4xf32> to vector<4xf32>
    %6 = vector.extract_strided_slice %0 {offsets = [0, 0, 0], sizes = [2, 14, 4], strides = [1, 1, 1]} : vector<2x16x4xf32> to vector<2x14x4xf32>
    %7 = vector.shape_cast %5 : vector<4xf32> to vector<1x1x4xf32>
    %8 = vector.broadcast %7 : vector<1x1x4xf32> to vector<2x14x4xf32>
    %9 = arith.mulf %8, %6 : vector<2x14x4xf32>
    %10 = arith.addf %3, %9 : vector<2x14x4xf32>
    %c1 = arith.constant 1 : index
    %c0_6 = arith.constant 0 : index
    %11 = vector.load %arg2[%c1, %c0_6] : memref<3x4xf32, #tpu.memory_space<vmem>>, vector<1x4xf32>
    %12 = vector.shape_cast %11 : vector<1x4xf32> to vector<4xf32>
    %13 = vector.extract_strided_slice %0 {offsets = [0, 1, 0], sizes = [2, 14, 4], strides = [1, 1, 1]} : vector<2x16x4xf32> to vector<2x14x4xf32>
    %14 = vector.shape_cast %12 : vector<4xf32> to vector<1x1x4xf32>
    %15 = vector.broadcast %14 : vector<1x1x4xf32> to vector<2x14x4xf32>
    %16 = arith.mulf %15, %13 : vector<2x14x4xf32>
    %17 = arith.addf %10, %16 : vector<2x14x4xf32>
    %c2 = arith.constant 2 : index
    %c0_7 = arith.constant 0 : index
    %18 = vector.load %arg2[%c2, %c0_7] : memref<3x4xf32, #tpu.memory_space<vmem>>, vector<1x4xf32>
    %19 = vector.shape_cast %18 : vector<1x4xf32> to vector<4xf32>
    %20 = vector.extract_strided_slice %0 {offsets = [0, 2, 0], sizes = [2, 14, 4], strides = [1, 1, 1]} : vector<2x16x4xf32> to vector<2x14x4xf32>
    %21 = vector.shape_cast %19 : vector<4xf32> to vector<1x1x4xf32>
    %22 = vector.broadcast %21 : vector<1x1x4xf32> to vector<2x14x4xf32>
    %23 = arith.mulf %22, %20 : vector<2x14x4xf32>
    %24 = arith.addf %17, %23 : vector<2x14x4xf32>
    %25 = vector.shape_cast %24 : vector<2x14x4xf32> to vector<28x4xf32>
    %c0_8 = arith.constant 0 : index
    %c0_9 = arith.constant 0 : index
    %26 = vector.load %arg4[%c0_8, %c0_9] : memref<4x12xf32, #tpu.memory_space<vmem>>, vector<4x12xf32>
    %cst = arith.constant dense<0.000000e+00> : vector<28x12xf32>
    %27 = tpu.matmul %25, %26, %cst {dimension_numbers = #tpu.dot_dimension_numbers<[1], [0], [0], [1], [0, 0, 1, 1], [], []>} : vector<28x4xf32>, vector<4x12xf32>, vector<28x12xf32> -> vector<28x12xf32>
    %c0_10 = arith.constant 0 : index
    %c0_11 = arith.constant 0 : index
    %28 = vector.load %arg5[%c0_10, %c0_11] : memref<1x12xf32, #tpu.memory_space<vmem>>, vector<1x12xf32>
    %29 = vector.broadcast %28 : vector<1x12xf32> to vector<28x12xf32>
    %30 = arith.addf %27, %29 : vector<28x12xf32>
    %31 = vector.extract_strided_slice %30 {offsets = [0, 0], sizes = [28, 4], strides = [1, 1]} : vector<28x12xf32> to vector<28x4xf32>
    %32 = vector.shape_cast %31 : vector<28x4xf32> to vector<2x14x4xf32>
    %33 = vector.extract_strided_slice %30 {offsets = [0, 4], sizes = [28, 4], strides = [1, 1]} : vector<28x12xf32> to vector<28x4xf32>
    %34 = vector.shape_cast %33 : vector<28x4xf32> to vector<2x14x4xf32>
    %35 = vector.extract_strided_slice %30 {offsets = [0, 8], sizes = [28, 4], strides = [1, 1]} : vector<28x12xf32> to vector<28x4xf32>
    %36 = vector.shape_cast %35 : vector<28x4xf32> to vector<2x14x4xf32>
    "tpu.trace_start"() <{level = 10 : i32, message = "btc,bsc->bts"}> : () -> ()
    %cst_12 = arith.constant dense<0.000000e+00> : vector<2x14x14xf32>
    %37 = tpu.matmul %32, %34, %cst_12 {dimension_numbers = #tpu.dot_dimension_numbers<[2], [2], [1], [1], [0, 0, 0, 1, 1, 1], [0], [0]>} : vector<2x14x4xf32>, vector<2x14x4xf32>, vector<2x14x14xf32> -> vector<2x14x14xf32>
    "tpu.trace_stop"() : () -> ()
    %cst_13 = arith.constant 5.000000e-01 : f32
    %38 = vector.broadcast %cst_13 : f32 to vector<2x14x14xf32>
    %39 = arith.mulf %37, %38 : vector<2x14x14xf32>
    %40 = arith.negf %39 : vector<2x14x14xf32>
    %41 = math.exp %40 : vector<2x14x14xf32>
    %cst_14 = arith.constant 1.000000e+00 : f32
    %42 = vector.broadcast %cst_14 : f32 to vector<2x14x14xf32>
    %43 = arith.addf %42, %41 : vector<2x14x14xf32>
    %44 = arith.divf %42, %43 : vector<2x14x14xf32>
    "tpu.trace_start"() <{level = 10 : i32, message = "bts,bsc->btc"}> : () -> ()
    %cst_15 = arith.constant dense<0.000000e+00> : vector<2x14x4xf32>
    %45 = tpu.matmul %44, %36, %cst_15 {dimension_numbers = #tpu.dot_dimension_numbers<[2], [1], [1], [2], [0, 0, 0, 1, 1, 2], [0], [0]>} : vector<2x14x14xf32>, vector<2x14x4xf32>, vector<2x14x4xf32> -> vector<2x14x4xf32>
    "tpu.trace_stop"() : () -> ()
    %46 = vector.shape_cast %45 : vector<2x14x4xf32> to vector<28x4xf32>
    %c0_16 = arith.constant 0 : index
    %c0_17 = arith.constant 0 : index
    %47 = vector.load %arg6[%c0_16, %c0_17] : memref<4x4xf32, #tpu.memory_space<vmem>>, vector<4x4xf32>
    %cst_18 = arith.constant dense<0.000000e+00> : vector<28x4xf32>
    %48 = tpu.matmul %46, %47, %cst_18 {dimension_numbers = #tpu.dot_dimension_numbers<[1], [0], [0], [1], [0, 0, 1, 1], [], []>} : vector<28x4xf32>, vector<4x4xf32>, vector<28x4xf32> -> vector<28x4xf32>
    %c0_19 = arith.constant 0 : index
    %c0_20 = arith.constant 0 : index
    %49 = vector.load %arg7[%c0_19, %c0_20] : memref<1x4xf32, #tpu.memory_space<vmem>>, vector<1x4xf32>
    %50 = vector.broadcast %49 : vector<1x4xf32> to vector<28x4xf32>
    %51 = arith.addf %48, %50 : vector<28x4xf32>
    %52 = vector.shape_cast %51 : vector<28x4xf32> to vector<2x14x4xf32>
    %cst_21 = arith.constant dense<0.000000e+00> : vector<2x4xf32>
    %53 = vector.multi_reduction <add>, %52, %cst_21 [1] : vector<2x14x4xf32> to vector<2x4xf32>
    %cst_22 = arith.constant 0.0714285746 : f32
    %54 = vector.broadcast %cst_22 : f32 to vector<2x4xf32>
    %55 = arith.mulf %53, %54 : vector<2x4xf32>
    %cst_23 = arith.constant 0.000000e+00 : f32
    %56 = vector.broadcast %cst_23 : f32 to vector<2x4xf32>
    %57 = arith.maximumf %55, %56 : vector<2x4xf32>
    %c0_24 = arith.constant 0 : index
    %c0_25 = arith.constant 0 : index
    %58 = vector.load %arg8[%c0_24, %c0_25] : memref<2x4xf32, #tpu.memory_space<vmem>>, vector<2x4xf32>
    tpu.vector_store %arg8[%c0_24, %c0_25], %57 {strides = array<i32>} : memref<2x4xf32, #tpu.memory_space<vmem>>, vector<2x4xf32>,
    return
  }
  func.func @transform_0(%arg0: i32) -> (i32, i32, i32) {
    %c0_i32 = arith.constant 0 : i32
    %c0_i32_0 = arith.constant 0 : i32
    %c0_i32_1 = arith.constant 0 : i32
    return %arg0, %c0_i32, %c0_i32_0 : i32, i32, i32
  }
  func.func @transform_1(%arg0: i32) -> (i32, i32) {
    %c0_i32 = arith.constant 0 : i32
    %c0_i32_0 = arith.constant 0 : i32
    %c0_i32_1 = arith.constant 0 : i32
    return %c0_i32, %c0_i32_0 : i32, i32
  }
  func.func @transform_2(%arg0: i32) -> (i32, i32) {
    %c0_i32 = arith.constant 0 : i32
    %c0_i32_0 = arith.constant 0 : i32
    %c0_i32_1 = arith.constant 0 : i32
    return %c0_i32, %c0_i32_0 : i32, i32
  }
  func.func @transform_3(%arg0: i32) -> (i32, i32) {
    %c0_i32 = arith.constant 0 : i32
    %c0_i32_0 = arith.constant 0 : i32
    %c0_i32_1 = arith.constant 0 : i32
    return %c0_i32, %c0_i32_0 : i32, i32
  }
  func.func @transform_4(%arg0: i32) -> (i32, i32) {
    %c0_i32 = arith.constant 0 : i32
    %c0_i32_0 = arith.constant 0 : i32
    %c0_i32_1 = arith.constant 0 : i32
    return %c0_i32, %c0_i32_0 : i32, i32
  }
  func.func @transform_5(%arg0: i32) -> (i32, i32) {
    %c0_i32 = arith.constant 0 : i32
    %c0_i32_0 = arith.constant 0 : i32
    %c0_i32_1 = arith.constant 0 : i32
    return %c0_i32, %c0_i32_0 : i32, i32
  }
  func.func @transform_6(%arg0: i32) -> (i32, i32) {
    %c0_i32 = arith.constant 0 : i32
    %c0_i32_0 = arith.constant 0 : i32
    %c0_i32_1 = arith.constant 0 : i32
    return %c0_i32, %c0_i32_0 : i32, i32
  }
  func.func @transform_7(%arg0: i32) -> (i32, i32) {
    %c0_i32 = arith.constant 0 : i32
    %c0_i32_0 = arith.constant 0 : i32
    return %arg0, %c0_i32 : i32, i32
  }
}

</mosaic_0001>

<llo_original>
// kernel: tpu_custom_call.1
$region0: #{tpu_custom_call.1}
  #allocation0 [shape = 'u32[]', space=smem, size = 0x4, offset = 0x4, fixed_abs, tag = 'smem constant byte address 0x4 - core index']
  #allocation1 [shape = 'u32[72,128]{1,0:T(1,128)}', space=vmem, size = 0x9000, scoped, tag = 'internal scratch']
  %s0 = inlined_call_operand.vmem [shape: f32[2,16,4], index: 0, kind: input, shape index: {}]
  %s1 = inlined_call_operand.vmem [shape: f32[3,4], index: 1, kind: input, shape index: {}]
  %s2 = inlined_call_operand.vmem [shape: f32[1,4], index: 2, kind: input, shape index: {}]
  %s3 = inlined_call_operand.vmem [shape: f32[4,12], index: 3, kind: input, shape index: {}]
  %s4 = inlined_call_operand.vmem [shape: f32[1,12], index: 4, kind: input, shape index: {}]
  %s5 = inlined_call_operand.vmem [shape: f32[4,4], index: 5, kind: input, shape index: {}]
  %s6 = inlined_call_operand.vmem [shape: f32[1,4], index: 6, kind: input, shape index: {}]
  %s7 = inlined_call_operand.hbm [shape: f32[2,4], index: 7, kind: output, shape index: {}]
  %s8 = sld [smem:[#allocation0]]
  $region38: #{tpu_custom_call.1} parent=0
    _
  %s10 = ssub.s32 1, %s8
  %s11 = scalar_select 0, %s10, %s8
  $region1: #{tpu_custom_call.1} parent=0
    #allocation2 [shape = 'u8[1024]{0}', space=vmem, size = 0x400, scoped, tag = 'output window, operand 0, single buffered']
    #allocation3 [shape = 's32[1]{0}', space=sflag, size = 0x4, scoped, tag = 'scoped memory for tpu_custom_call.1']
    %12 = vsyncpa [#allocation3], 0
    // Predicated region
    $region2: #{tpu_custom_call.1} parent=1 // pred_check
      _
    $region3: #{tpu_custom_call.1} parent=1 // pred_check_branch
      %14 = sbr.rel (0) target = $region5
    $region4: #{tpu_custom_call.1} parent=1 // pred_region
      _
    $region5: #{tpu_custom_call.1} parent=1 // pred_fallthru
      _
    // Predicated region
    $region6: #{tpu_custom_call.1} parent=1 // pred_check
      _
    $region7: #{tpu_custom_call.1} parent=1 // pred_check_branch
      %16 = sbr.rel (0) target = $region9
    $region8: #{tpu_custom_call.1} parent=1 // pred_region
      _
    $region9: #{tpu_custom_call.1} parent=1 // pred_fallthru
      _
    // Predicated region
    $region10: #{tpu_custom_call.1} parent=1 // pred_check
      _
    $region11: #{tpu_custom_call.1} parent=1 // pred_check_branch
      %18 = sbr.rel (0) target = $region13
    $region12: #{tpu_custom_call.1} parent=1 // pred_region
      _
    $region13: #{tpu_custom_call.1} parent=1 // pred_fallthru
      _
    // Predicated region
    $region14: #{tpu_custom_call.1} parent=1 // pred_check
      _
    $region15: #{tpu_custom_call.1} parent=1 // pred_check_branch
      %20 = sbr.rel (0) target = $region17
    $region16: #{tpu_custom_call.1} parent=1 // pred_region
      _
    $region17: #{tpu_custom_call.1} parent=1 // pred_fallthru
      _
    // Predicated region
    $region18: #{tpu_custom_call.1} parent=1 // pred_check
      _
    $region19: #{tpu_custom_call.1} parent=1 // pred_check_branch
      %22 = sbr.rel (0) target = $region21
    $region20: #{tpu_custom_call.1} parent=1 // pred_region
      _
    $region21: #{tpu_custom_call.1} parent=1 // pred_fallthru
      _
    // Predicated region
    $region22: #{tpu_custom_call.1} parent=1 // pred_check
      _
    $region23: #{tpu_custom_call.1} parent=1 // pred_check_branch
      %24 = sbr.rel (0) target = $region25
    $region24: #{tpu_custom_call.1} parent=1 // pred_region
      _
    $region25: #{tpu_custom_call.1} parent=1 // pred_fallthru
      _
    // Predicated region
    $region26: #{tpu_custom_call.1} parent=1 // pred_check
      _
    $region27: #{tpu_custom_call.1} parent=1 // pred_check_branch
      %26 = sbr.rel (0) target = $region29
    $region28: #{tpu_custom_call.1} parent=1 // pred_region
      _
    $region29: #{tpu_custom_call.1} parent=1 // pred_fallthru
      _
    %v27 = vld [vmem:[%s0] sm:$0xff]
    %v28 = vld [vmem:[%s0 + $0x8] sm:$0xff]
    %v29 = vld [vmem:[%s0 + $0x10] sm:$0xff]
    %v30 = vld [vmem:[%s0 + $0x18] sm:$0xff]
    %v31 = vld [vmem:[%s2] sm:$0x1]
    %v33 = vperm.slane %v31, 0
    %v35 = vld [vmem:[%s1] sm:$0x1]
    %v36 = vperm.slane %v35, 0
    %v37 = vmul.f32 %v36, %v27
    %v38 = vmul.f32 %v36, %v28
    %v39 = vmul.f32 %v36, %v29
    %v40 = vmul.f32 %v36, %v30
    %v41 = vadd.f32 %v33, %v37
    %v42 = vadd.f32 %v33, %v38
    %v43 = vadd.f32 %v33, %v39
    %v44 = vadd.f32 %v33, %v40
    %v45 = vld [vmem:[%s1 + $0x1] sm:$0x1]
    %v46 = vperm.slane %v45, 0
    %v47 = vmul.f32 %v46, %v27
    %v48 = vmul.f32 %v46, %v28
    %v49 = vmul.f32 %v46, %v29
    %v50 = vmul.f32 %v46, %v30
    %vm55 = vcmask 1046528
    %v56 = vrot.slane %v47, 1
    %v57 = vrot.slane %v48, 1
    %v58 = vsel %vm55, %v56, %v57
    %v59 = vrot.slane %v49, 1
    %v60 = vrot.slane %v50, 1
    %v61 = vsel %vm55, %v59, %v60
    %v66 = vadd.f32 %v41, %v58
    %v67 = vadd.f32 %v42, %v57
    %v68 = vadd.f32 %v43, %v61
    %v69 = vadd.f32 %v44, %v60
    %v70 = vld [vmem:[%s1 + $0x2] sm:$0x1]
    %v71 = vperm.slane %v70, 0
    %v72 = vmul.f32 %v71, %v27
    %v73 = vmul.f32 %v71, %v28
    %v74 = vmul.f32 %v71, %v29
    %v75 = vmul.f32 %v71, %v30
    %vm80 = vcmask 1045504
    %v81 = vrot.slane %v72, 2
    %v82 = vrot.slane %v73, 2
    %v83 = vsel %vm80, %v81, %v82
    %v84 = vrot.slane %v74, 2
    %v85 = vrot.slane %v75, 2
    %v86 = vsel %vm80, %v84, %v85
    %v91 = vadd.f32 %v66, %v83
    %v92 = vadd.f32 %v67, %v82
    %v93 = vadd.f32 %v68, %v86
    %v94 = vadd.f32 %v69, %v85
    %v99 = vrot.slane %v91, 2
    %v100 = vrot.slane %v91, 4
    %v101 = vrot.slane %v91, 6
    %v102 = vrot.slane %v92, 2
    %v103 = vrot.slane %v92, 4
    %v104 = vrot.slane %v93, 2
    %v105 = vrot.slane %v93, 4
    %v106 = vrot.slane %v93, 6
    %v107 = vrot.slane %v94, 2
    %v108 = vrot.slane %v94, 4
    %v109 = vld [vmem:[%s3] sm:$0xf]
    %v110 = vld [vmem:[%s4] sm:$0x1]
    %v112 = vperm.slane %v110, 0
    %114 = vst [vmem:[#allocation1] ss:$4 sm:$0xff] %v91
    %s115 = scalar_lea.vmem [#allocation1], 1
    %116 = vst [vmem:[%s115] ss:$4 sm:$0xff] %v99
    %s117 = scalar_lea.vmem [#allocation1], 2
    %118 = vst [vmem:[%s117] ss:$4 sm:$0xff] %v100
    %s119 = scalar_lea.vmem [#allocation1], 3
    %120 = vst [vmem:[%s119] ss:$4 sm:$0xff] %v101
    %s121 = scalar_lea.vmem [#allocation1], 32
    %122 = vst [vmem:[%s121] ss:$4 sm:$0xff] %v92
    %s123 = scalar_lea.vmem [#allocation1], 33
    %124 = vst [vmem:[%s123] ss:$4 sm:$0xff] %v102
    %s125 = scalar_lea.vmem [#allocation1], 34
    %126 = vst [vmem:[%s125] ss:$4 sm:$0xff] %v103
    %s127 = scalar_lea.vmem [#allocation1], 35
    %128 = vst [vmem:[%s127] ss:$4 sm:$0xff] %v93
    %v129 = vld.sshfl [vmem:[#allocation1] sm:$0xff pattern:$0x73625140]
    %v130 = vld.sshfl [vmem:[#allocation1 + $0x20] sm:$0xff pattern:$0x73625140]
    %131 = vst [vmem:[#allocation1] ss:$4 sm:$0xff] %v104
    %132 = vst [vmem:[%s115] ss:$4 sm:$0xff] %v105
    %133 = vst [vmem:[%s117] ss:$4 sm:$0xff] %v106
    %134 = vst [vmem:[%s119] ss:$4 sm:$0xff] %v94
    %135 = vst [vmem:[%s121] ss:$4 sm:$0xff] %v107
    %136 = vst [vmem:[%s123] ss:$4 sm:$0xff] %v108
    %v137 = vld.sshfl [vmem:[#allocation1] sm:$0xff pattern:$0x73625140]
    %v138 = vld.sshfl [vmem:[#allocation1 + $0x20] sm:$0xff pattern:$0x73625140]
    %vm139 = vcmask 31744
    %v140 = vsel %vm139, %v129, 0
    %v142 = vsel %vm139, %v130, 0
    %v144 = vsel %vm139, %v137, 0
    %v146 = vsel %vm139, %v138, 0
    %vm148 = vcmask 1043456
    %v150 = vsel %vm148, %v109, 0
    %152 = vmatpush.msra.mxu0 0.0
    %153 = vmatpush.msra.mxu0 0.0
    %154 = vmatpush.msra.mxu0 0.0
    %155 = vmatpush.msra.mxu0 0.0
    %156 = vmatpush.msra.mxu0 0.0
    %157 = vmatpush.msra.mxu0 0.0
    %158 = vmatpush.msra.mxu0 0.0
    %159 = vmatpush.msra.mxu0 0.0
    %160 = vmatpush.msra.mxu0 0.0
    %161 = vmatpush.msra.mxu0 0.0
    %162 = vmatpush.msra.mxu0 0.0
    %163 = vmatpush.msra.mxu0 0.0
    %164 = vmatpush.msra.mxu0 0.0
    %165 = vmatpush.msra.mxu0 0.0
    %166 = vmatpush.msra.mxu0 0.0
    %167 = vmatpush.msra.mxu0 %v150
    %168 = vmatmul.f32.gmra.mxu0 %v140
    %v169 = vpop.f32.mrf.mxu0
    %v170 = vadd.f32 %v112, %v169
    %171 = vmatmul.f32.gmra.mxu0 %v142
    %v172 = vpop.f32.mrf.mxu0
    %v173 = vadd.f32 %v112, %v172
    %174 = vmatmul.f32.gmra.mxu0 %v144
    %v175 = vpop.f32.mrf.mxu0
    %v176 = vadd.f32 %v112, %v175
    %177 = vmatmul.f32.gmra.mxu0 %v146
    %v178 = vpop.f32.mrf.mxu0
    %v179 = vadd.f32 %v112, %v178
    %180 = vdwg.mxu0
    %v185 = vrot.slane %v170, 2
    %v186 = vrot.slane %v170, 4
    %v187 = vrot.slane %v170, 6
    %v188 = vrot.slane %v173, 2
    %v189 = vrot.slane %v173, 4
    %v190 = vrot.slane %v173, 6
    %v191 = vrot.slane %v176, 2
    %v192 = vrot.slane %v176, 4
    %v193 = vrot.slane %v176, 6
    %v194 = vrot.slane %v179, 2
    %195 = vst [vmem:[#allocation1] ss:$4 sm:$0xff] %v170
    %s196 = scalar_lea.vmem [#allocation1], 1
    %197 = vst [vmem:[%s196] ss:$4 sm:$0xff] %v185
    %s198 = scalar_lea.vmem [#allocation1], 2
    %199 = vst [vmem:[%s198] ss:$4 sm:$0xff] %v186
    %s200 = scalar_lea.vmem [#allocation1], 3
    %201 = vst [vmem:[%s200] ss:$4 sm:$0xff] %v187
    %s202 = scalar_lea.vmem [#allocation1], 32
    %203 = vst [vmem:[%s202] ss:$4 sm:$0xff] %v173
    %s204 = scalar_lea.vmem [#allocation1], 33
    %205 = vst [vmem:[%s204] ss:$4 sm:$0xff] %v188
    %s206 = scalar_lea.vmem [#allocation1], 34
    %207 = vst [vmem:[%s206] ss:$4 sm:$0xff] %v189
    %v208 = vld.sshfl [vmem:[#allocation1] sm:$0xff pattern:$0x73625140]
    %v209 = vld.sshfl [vmem:[#allocation1 + $0x20] sm:$0xff pattern:$0x73625140]
    %210 = vst [vmem:[#allocation1] ss:$4 sm:$0xff] %v170
    %s211 = scalar_lea.vmem [#allocation1], 1
    %212 = vst [vmem:[%s211] ss:$4 sm:$0xff] %v185
    %s213 = scalar_lea.vmem [#allocation1], 2
    %214 = vst [vmem:[%s213] ss:$4 sm:$0xff] %v186
    %s215 = scalar_lea.vmem [#allocation1], 3
    %216 = vst [vmem:[%s215] ss:$4 sm:$0xff] %v187
    %s217 = scalar_lea.vmem [#allocation1], 32
    %218 = vst [vmem:[%s217] ss:$4 sm:$0xff] %v173
    %s219 = scalar_lea.vmem [#allocation1], 33
    %220 = vst [vmem:[%s219] ss:$4 sm:$0xff] %v188
    %s221 = scalar_lea.vmem [#allocation1], 34
    %222 = vst [vmem:[%s221] ss:$4 sm:$0xff] %v189
    %v223 = vld.sshfl [vmem:[#allocation1] sm:$0xff pattern:$0x73625140]
    %v224 = vld.sshfl [vmem:[#allocation1 + $0x20] sm:$0xff pattern:$0x73625140]
    %225 = vrot.lane.b32.xlu0 %v223, 124
    %v226 = vpop.permute.xlu0 %225
    %227 = vrot.lane.b32.xlu0 %v224, 124
    %v228 = vpop.permute.xlu0 %227
    %v229 = vsel %vm139, %v208, 0
    %v231 = vsel %vm139, %v209, 0
    %v233 = vsel %vm139, %v226, 0
    %v235 = vsel %vm139, %v228, 0
    %237 = vmatpush.xpose.msra.mxu0 0.0
    %238 = vmatpush.xpose.msra.mxu0 0.0
    %239 = vmatpush.xpose.msra.mxu0 0.0
    %240 = vmatpush.xpose.msra.mxu0 0.0
    %241 = vmatpush.xpose.msra.mxu0 0.0
    %242 = vmatpush.xpose.msra.mxu0 0.0
    %243 = vmatpush.xpose.msra.mxu0 0.0
    %244 = vmatpush.xpose.msra.mxu0 0.0
    %245 = vmatpush.xpose.msra.mxu0 0.0
    %246 = vmatpush.xpose.msra.mxu0 0.0
    %247 = vmatpush.xpose.msra.mxu0 0.0
    %248 = vmatpush.xpose.msra.mxu0 0.0
    %249 = vmatpush.xpose.msra.mxu0 0.0
    %250 = vmatpush.xpose.msra.mxu0 0.0
    %251 = vmatpush.xpose.msra.mxu0 %v235
    %252 = vmatpush.xpose.msra.mxu0 %v233
    %253 = vmatmul.f32.gmra.mxu0 %v229
    %v254 = vpop.f32.mrf.mxu0
    %v255 = vadd.f32 0.0, %v254
    %256 = vmatmul.f32.gmra.mxu0 %v231
    %v257 = vpop.f32.mrf.mxu0
    %v258 = vadd.f32 0.0, %v257
    %259 = vdwg.mxu0
    %260 = vst [vmem:[#allocation1] ss:$4 sm:$0xff] %v190
    %s261 = scalar_lea.vmem [#allocation1], 1
    %262 = vst [vmem:[%s261] ss:$4 sm:$0xff] %v176
    %s263 = scalar_lea.vmem [#allocation1], 2
    %264 = vst [vmem:[%s263] ss:$4 sm:$0xff] %v191
    %s265 = scalar_lea.vmem [#allocation1], 3
    %266 = vst [vmem:[%s265] ss:$4 sm:$0xff] %v192
    %s267 = scalar_lea.vmem [#allocation1], 32
    %268 = vst [vmem:[%s267] ss:$4 sm:$0xff] %v193
    %s269 = scalar_lea.vmem [#allocation1], 33
    %270 = vst [vmem:[%s269] ss:$4 sm:$0xff] %v179
    %s271 = scalar_lea.vmem [#allocation1], 34
    %272 = vst [vmem:[%s271] ss:$4 sm:$0xff] %v194
    %v273 = vld.sshfl [vmem:[#allocation1] sm:$0xff pattern:$0x73625140]
    %v274 = vld.sshfl [vmem:[#allocation1 + $0x20] sm:$0xff pattern:$0x73625140]
    %275 = vst [vmem:[#allocation1] ss:$4 sm:$0xff] %v190
    %s276 = scalar_lea.vmem [#allocation1], 1
    %277 = vst [vmem:[%s276] ss:$4 sm:$0xff] %v176
    %s278 = scalar_lea.vmem [#allocation1], 2
    %279 = vst [vmem:[%s278] ss:$4 sm:$0xff] %v191
    %s280 = scalar_lea.vmem [#allocation1], 3
    %281 = vst [vmem:[%s280] ss:$4 sm:$0xff] %v192
    %s282 = scalar_lea.vmem [#allocation1], 32
    %283 = vst [vmem:[%s282] ss:$4 sm:$0xff] %v193
    %s284 = scalar_lea.vmem [#allocation1], 33
    %285 = vst [vmem:[%s284] ss:$4 sm:$0xff] %v179
    %s286 = scalar_lea.vmem [#allocation1], 34
    %287 = vst [vmem:[%s286] ss:$4 sm:$0xff] %v194
    %v288 = vld.sshfl [vmem:[#allocation1] sm:$0xff pattern:$0x73625140]
    %v289 = vld.sshfl [vmem:[#allocation1 + $0x20] sm:$0xff pattern:$0x73625140]
    %290 = vrot.lane.b32.xlu0 %v288, 124
    %v291 = vpop.permute.xlu0 %290
    %292 = vrot.lane.b32.xlu0 %v289, 124
    %v293 = vpop.permute.xlu0 %292
    %v294 = vsel %vm139, %v273, 0
    %v296 = vsel %vm139, %v274, 0
    %v298 = vsel %vm139, %v291, 0
    %v300 = vsel %vm139, %v293, 0
    %302 = vmatpush.xpose.msra.mxu0 0.0
    %303 = vmatpush.xpose.msra.mxu0 0.0
    %304 = vmatpush.xpose.msra.mxu0 0.0
    %305 = vmatpush.xpose.msra.mxu0 0.0
    %306 = vmatpush.xpose.msra.mxu0 0.0
    %307 = vmatpush.xpose.msra.mxu0 0.0
    %308 = vmatpush.xpose.msra.mxu0 0.0
    %309 = vmatpush.xpose.msra.mxu0 0.0
    %310 = vmatpush.xpose.msra.mxu0 0.0
    %311 = vmatpush.xpose.msra.mxu0 0.0
    %312 = vmatpush.xpose.msra.mxu0 0.0
    %313 = vmatpush.xpose.msra.mxu0 0.0
    %314 = vmatpush.xpose.msra.mxu0 0.0
    %315 = vmatpush.xpose.msra.mxu0 0.0
    %316 = vmatpush.xpose.msra.mxu0 %v300
    %317 = vmatpush.xpose.msra.mxu0 %v298
    %318 = vmatmul.f32.gmra.mxu0 %v294
    %v319 = vpop.f32.mrf.mxu0
    %v320 = vadd.f32 0.0, %v319
    %321 = vmatmul.f32.gmra.mxu0 %v296
    %v322 = vpop.f32.mrf.mxu0
    %v323 = vadd.f32 0.0, %v322
    %324 = vdwg.mxu0
    %v325 = vmul.f32 %v255, 0.5
    %v326 = vmul.f32 %v258, 0.5
    %v327 = vmul.f32 %v320, 0.5
    %v328 = vmul.f32 %v323, 0.5
    %v329 = vxor.u32 %v325, 2147483648
    %v330 = vxor.u32 %v326, 2147483648
    %v331 = vxor.u32 %v327, 2147483648
    %v332 = vxor.u32 %v328, 2147483648
    %v333 = vmul.f32 %v329, 1.442695
    %v334 = vpow.pop %v333
    %v335 = vmul.f32 %v330, 1.442695
    %v336 = vpow.pop %v335
    %v337 = vmul.f32 %v331, 1.442695
    %v338 = vpow.pop %v337
    %v339 = vmul.f32 %v332, 1.442695
    %v340 = vpow.pop %v339
    %v341 = vadd.f32 %v334, 1.0
    %v342 = vadd.f32 %v336, 1.0
    %v343 = vadd.f32 %v338, 1.0
    %v344 = vadd.f32 %v340, 1.0
    %v345 = vrcp.pop %v341
    %v346 = vmul.f32 %v341, %v345
    %v347 = vsub.f32 1.0, %v346
    %v348 = vmul.f32 %v345, %v347
    %v349 = vadd.f32 %v345, %v348
    %vm350 = vweird.f32 %v341
    %vm351 = vweird.f32 %v345
    %vm352 = vmor %vm350, %vm351
    %v353 = vsel %vm352, %v345, %v349
    %v354 = vand.u32 2147483647, %v341
    %vm355 = vcmp.eq.f32.partialorder %v354, 8.507059e+37
    %v356 = vand.u32 %v341, 2147483648
    %v357 = vor.u32 1.1754944e-38, %v356
    %v358 = vsel %vm355, %v357, %v353
    %v359 = vmul.f32 1.0, %v358
    %v360 = vrcp.pop %v342
    %v361 = vmul.f32 %v342, %v360
    %v362 = vsub.f32 1.0, %v361
    %v363 = vmul.f32 %v360, %v362
    %v364 = vadd.f32 %v360, %v363
    %vm365 = vweird.f32 %v342
    %vm366 = vweird.f32 %v360
    %vm367 = vmor %vm365, %vm366
    %v368 = vsel %vm367, %v360, %v364
    %v369 = vand.u32 2147483647, %v342
    %vm370 = vcmp.eq.f32.partialorder %v369, 8.507059e+37
    %v371 = vand.u32 %v342, 2147483648
    %v372 = vor.u32 1.1754944e-38, %v371
    %v373 = vsel %vm370, %v372, %v368
    %v374 = vmul.f32 1.0, %v373
    %v375 = vrcp.pop %v343
    %v376 = vmul.f32 %v343, %v375
    %v377 = vsub.f32 1.0, %v376
    %v378 = vmul.f32 %v375, %v377
    %v379 = vadd.f32 %v375, %v378
    %vm380 = vweird.f32 %v343
    %vm381 = vweird.f32 %v375
    %vm382 = vmor %vm380, %vm381
    %v383 = vsel %vm382, %v375, %v379
    %v384 = vand.u32 2147483647, %v343
    %vm385 = vcmp.eq.f32.partialorder %v384, 8.507059e+37
    %v386 = vand.u32 %v343, 2147483648
    %v387 = vor.u32 1.1754944e-38, %v386
    %v388 = vsel %vm385, %v387, %v383
    %v389 = vmul.f32 1.0, %v388
    %v390 = vrcp.pop %v344
    %v391 = vmul.f32 %v344, %v390
    %v392 = vsub.f32 1.0, %v391
    %v393 = vmul.f32 %v390, %v392
    %v394 = vadd.f32 %v390, %v393
    %vm395 = vweird.f32 %v344
    %vm396 = vweird.f32 %v390
    %vm397 = vmor %vm395, %vm396
    %v398 = vsel %vm397, %v390, %v394
    %v399 = vand.u32 2147483647, %v344
    %vm400 = vcmp.eq.f32.partialorder %v399, 8.507059e+37
    %v401 = vand.u32 %v344, 2147483648
    %v402 = vor.u32 1.1754944e-38, %v401
    %v403 = vsel %vm400, %v402, %v398
    %v404 = vmul.f32 1.0, %v403
    %405 = vst [vmem:[#allocation1] ss:$4 sm:$0xff] %v170
    %s406 = scalar_lea.vmem [#allocation1], 1
    %407 = vst [vmem:[%s406] ss:$4 sm:$0xff] %v185
    %s408 = scalar_lea.vmem [#allocation1], 2
    %409 = vst [vmem:[%s408] ss:$4 sm:$0xff] %v186
    %s410 = scalar_lea.vmem [#allocation1], 3
    %411 = vst [vmem:[%s410] ss:$4 sm:$0xff] %v187
    %s412 = scalar_lea.vmem [#allocation1], 32
    %413 = vst [vmem:[%s412] ss:$4 sm:$0xff] %v173
    %s414 = scalar_lea.vmem [#allocation1], 33
    %415 = vst [vmem:[%s414] ss:$4 sm:$0xff] %v188
    %s416 = scalar_lea.vmem [#allocation1], 34
    %417 = vst [vmem:[%s416] ss:$4 sm:$0xff] %v189
    %v418 = vld.sshfl [vmem:[#allocation1] sm:$0xff pattern:$0x73625140]
    %v419 = vld.sshfl [vmem:[#allocation1 + $0x20] sm:$0xff pattern:$0x73625140]
    %420 = vrot.lane.b32.xlu0 %v418, 120
    %v421 = vpop.permute.xlu0 %420
    %422 = vrot.lane.b32.xlu0 %v419, 120
    %v423 = vpop.permute.xlu0 %422
    %vm425 = vcmask 113664
    %v427 = vsel %vm425, %v359, 0
    %v430 = vsel %vm425, %v374, 0
    %v432 = vsel %vm80, %v423, 0
    %434 = vmatpush.msra.mxu0 0.0
    %435 = vmatpush.msra.mxu0 0.0
    %436 = vmatpush.msra.mxu0 0.0
    %437 = vmatpush.msra.mxu0 0.0
    %438 = vmatpush.msra.mxu0 0.0
    %439 = vmatpush.msra.mxu0 0.0
    %440 = vmatpush.msra.mxu0 0.0
    %441 = vmatpush.msra.mxu0 0.0
    %442 = vmatpush.msra.mxu0 0.0
    %443 = vmatpush.msra.mxu0 0.0
    %444 = vmatpush.msra.mxu0 0.0
    %445 = vmatpush.msra.mxu0 0.0
    %446 = vmatpush.msra.mxu0 0.0
    %447 = vmatpush.msra.mxu0 0.0
    %448 = vmatpush.msra.mxu0 %v432
    %449 = vmatpush.msra.mxu0 %v421
    %450 = vmatmul.f32.gmra.mxu0 %v427
    %v451 = vpop.f32.mrf.mxu0
    %v452 = vadd.f32 0.0, %v451
    %453 = vmatmul.f32.gmra.mxu0 %v430
    %v454 = vpop.f32.mrf.mxu0
    %v455 = vadd.f32 0.0, %v454
    %456 = vdwg.mxu0
    %457 = vst [vmem:[#allocation1] ss:$4 sm:$0xff] %v190
    %s458 = scalar_lea.vmem [#allocation1], 1
    %459 = vst [vmem:[%s458] ss:$4 sm:$0xff] %v176
    %s460 = scalar_lea.vmem [#allocation1], 2
    %461 = vst [vmem:[%s460] ss:$4 sm:$0xff] %v191
    %s462 = scalar_lea.vmem [#allocation1], 3
    %463 = vst [vmem:[%s462] ss:$4 sm:$0xff] %v192
    %s464 = scalar_lea.vmem [#allocation1], 32
    %465 = vst [vmem:[%s464] ss:$4 sm:$0xff] %v193
    %s466 = scalar_lea.vmem [#allocation1], 33
    %467 = vst [vmem:[%s466] ss:$4 sm:$0xff] %v179
    %s468 = scalar_lea.vmem [#allocation1], 34
    %469 = vst [vmem:[%s468] ss:$4 sm:$0xff] %v194
    %v470 = vld.sshfl [vmem:[#allocation1] sm:$0xff pattern:$0x73625140]
    %v471 = vld.sshfl [vmem:[#allocation1 + $0x20] sm:$0xff pattern:$0x73625140]
    %472 = vrot.lane.b32.xlu0 %v470, 120
    %v473 = vpop.permute.xlu0 %472
    %474 = vrot.lane.b32.xlu0 %v471, 120
    %v475 = vpop.permute.xlu0 %474
    %v478 = vsel %vm425, %v389, 0
    %v481 = vsel %vm425, %v404, 0
    %v483 = vsel %vm80, %v475, 0
    %485 = vmatpush.msra.mxu0 0.0
    %486 = vmatpush.msra.mxu0 0.0
    %487 = vmatpush.msra.mxu0 0.0
    %488 = vmatpush.msra.mxu0 0.0
    %489 = vmatpush.msra.mxu0 0.0
    %490 = vmatpush.msra.mxu0 0.0
    %491 = vmatpush.msra.mxu0 0.0
    %492 = vmatpush.msra.mxu0 0.0
    %493 = vmatpush.msra.mxu0 0.0
    %494 = vmatpush.msra.mxu0 0.0
    %495 = vmatpush.msra.mxu0 0.0
    %496 = vmatpush.msra.mxu0 0.0
    %497 = vmatpush.msra.mxu0 0.0
    %498 = vmatpush.msra.mxu0 0.0
    %499 = vmatpush.msra.mxu0 %v483
    %500 = vmatpush.msra.mxu0 %v473
    %501 = vmatmul.f32.gmra.mxu0 %v478
    %v502 = vpop.f32.mrf.mxu0
    %v503 = vadd.f32 0.0, %v502
    %504 = vmatmul.f32.gmra.mxu0 %v481
    %v505 = vpop.f32.mrf.mxu0
    %v506 = vadd.f32 0.0, %v505
    %507 = vdwg.mxu0
    %v512 = vrot.slane %v452, 2
    %v513 = vrot.slane %v452, 4
    %v514 = vrot.slane %v452, 6
    %v515 = vrot.slane %v455, 2
    %v516 = vrot.slane %v455, 4
    %v517 = vrot.slane %v503, 2
    %v518 = vrot.slane %v503, 4
    %v519 = vrot.slane %v503, 6
    %v520 = vrot.slane %v506, 2
    %v521 = vrot.slane %v506, 4
    %v522 = vld [vmem:[%s5] sm:$0xf]
    %v523 = vld [vmem:[%s6] sm:$0x1]
    %v525 = vperm.slane %v523, 0
    %527 = vst [vmem:[#allocation1] ss:$4 sm:$0xff] %v452
    %s528 = scalar_lea.vmem [#allocation1], 1
    %529 = vst [vmem:[%s528] ss:$4 sm:$0xff] %v512
    %s530 = scalar_lea.vmem [#allocation1], 2
    %531 = vst [vmem:[%s530] ss:$4 sm:$0xff] %v513
    %s532 = scalar_lea.vmem [#allocation1], 3
    %533 = vst [vmem:[%s532] ss:$4 sm:$0xff] %v514
    %s534 = scalar_lea.vmem [#allocation1], 32
    %535 = vst [vmem:[%s534] ss:$4 sm:$0xff] %v455
    %s536 = scalar_lea.vmem [#allocation1], 33
    %537 = vst [vmem:[%s536] ss:$4 sm:$0xff] %v515
    %s538 = scalar_lea.vmem [#allocation1], 34
    %539 = vst [vmem:[%s538] ss:$4 sm:$0xff] %v516
    %s540 = scalar_lea.vmem [#allocation1], 35
    %541 = vst [vmem:[%s540] ss:$4 sm:$0xff] %v503
    %v542 = vld.sshfl [vmem:[#allocation1] sm:$0xff pattern:$0x73625140]
    %v543 = vld.sshfl [vmem:[#allocation1 + $0x20] sm:$0xff pattern:$0x73625140]
    %544 = vst [vmem:[#allocation1] ss:$4 sm:$0xff] %v517
    %545 = vst [vmem:[%s528] ss:$4 sm:$0xff] %v518
    %546 = vst [vmem:[%s530] ss:$4 sm:$0xff] %v519
    %547 = vst [vmem:[%s532] ss:$4 sm:$0xff] %v506
    %548 = vst [vmem:[%s534] ss:$4 sm:$0xff] %v520
    %549 = vst [vmem:[%s536] ss:$4 sm:$0xff] %v521
    %v550 = vld.sshfl [vmem:[#allocation1] sm:$0xff pattern:$0x73625140]
    %v551 = vld.sshfl [vmem:[#allocation1 + $0x20] sm:$0xff pattern:$0x73625140]
    %v552 = vsel %vm139, %v542, 0
    %v554 = vsel %vm139, %v543, 0
    %v556 = vsel %vm139, %v550, 0
    %v558 = vsel %vm139, %v551, 0
    %v561 = vsel %vm148, %v522, 0
    %563 = vmatpush.msra.mxu0 0.0
    %564 = vmatpush.msra.mxu0 0.0
    %565 = vmatpush.msra.mxu0 0.0
    %566 = vmatpush.msra.mxu0 0.0
    %567 = vmatpush.msra.mxu0 0.0
    %568 = vmatpush.msra.mxu0 0.0
    %569 = vmatpush.msra.mxu0 0.0
    %570 = vmatpush.msra.mxu0 0.0
    %571 = vmatpush.msra.mxu0 0.0
    %572 = vmatpush.msra.mxu0 0.0
    %573 = vmatpush.msra.mxu0 0.0
    %574 = vmatpush.msra.mxu0 0.0
    %575 = vmatpush.msra.mxu0 0.0
    %576 = vmatpush.msra.mxu0 0.0
    %577 = vmatpush.msra.mxu0 0.0
    %578 = vmatpush.msra.mxu0 %v561
    %579 = vmatmul.f32.gmra.mxu0 %v552
    %v580 = vpop.f32.mrf.mxu0
    %v581 = vadd.f32 %v525, %v580
    %582 = vmatmul.f32.gmra.mxu0 %v554
    %v583 = vpop.f32.mrf.mxu0
    %v584 = vadd.f32 %v525, %v583
    %585 = vmatmul.f32.gmra.mxu0 %v556
    %v586 = vpop.f32.mrf.mxu0
    %v587 = vadd.f32 %v525, %v586
    %588 = vmatmul.f32.gmra.mxu0 %v558
    %v589 = vpop.f32.mrf.mxu0
    %v590 = vadd.f32 %v525, %v589
    %591 = vdwg.mxu0
    %v596 = vrot.slane %v581, 2
    %v597 = vrot.slane %v581, 4
    %v598 = vrot.slane %v581, 6
    %v599 = vrot.slane %v584, 2
    %v600 = vrot.slane %v584, 4
    %v601 = vrot.slane %v584, 6
    %v602 = vrot.slane %v587, 2
    %v603 = vrot.slane %v587, 4
    %v604 = vrot.slane %v587, 6
    %v605 = vrot.slane %v590, 2
    %606 = vst [vmem:[#allocation1] ss:$4 sm:$0xff] %v581
    %s607 = scalar_lea.vmem [#allocation1], 1
    %608 = vst [vmem:[%s607] ss:$4 sm:$0xff] %v596
    %s609 = scalar_lea.vmem [#allocation1], 2
    %610 = vst [vmem:[%s609] ss:$4 sm:$0xff] %v597
    %s611 = scalar_lea.vmem [#allocation1], 3
    %612 = vst [vmem:[%s611] ss:$4 sm:$0xff] %v598
    %s613 = scalar_lea.vmem [#allocation1], 32
    %614 = vst [vmem:[%s613] ss:$4 sm:$0xff] %v584
    %s615 = scalar_lea.vmem [#allocation1], 33
    %616 = vst [vmem:[%s615] ss:$4 sm:$0xff] %v599
    %s617 = scalar_lea.vmem [#allocation1], 34
    %618 = vst [vmem:[%s617] ss:$4 sm:$0xff] %v600
    %v619 = vld.sshfl [vmem:[#allocation1] sm:$0xff pattern:$0x73625140]
    %v620 = vld.sshfl [vmem:[#allocation1 + $0x20] sm:$0xff pattern:$0x73625140]
    %621 = vst [vmem:[#allocation1] ss:$4 sm:$0xff] %v601
    %622 = vst [vmem:[%s607] ss:$4 sm:$0xff] %v587
    %623 = vst [vmem:[%s609] ss:$4 sm:$0xff] %v602
    %624 = vst [vmem:[%s611] ss:$4 sm:$0xff] %v603
    %625 = vst [vmem:[%s613] ss:$4 sm:$0xff] %v604
    %626 = vst [vmem:[%s615] ss:$4 sm:$0xff] %v590
    %627 = vst [vmem:[%s617] ss:$4 sm:$0xff] %v605
    %v628 = vld.sshfl [vmem:[#allocation1] sm:$0xff pattern:$0x73625140]
    %v629 = vld.sshfl [vmem:[#allocation1 + $0x20] sm:$0xff pattern:$0x73625140]
    %v634 = vsel %vm139, %v619, 0.0
    %vm635 = vcmask 29696
    %v636 = vsel %vm635, %v620, 0.0
    %v637 = vadd.f32 %v634, %v636
    %v638 = vrot.slane %v637, 4
    %v639 = vadd.f32 %v637, %v638
    %v640 = vrot.slane %v639, 2
    %v641 = vadd.f32 %v639, %v640
    %v642 = vrot.slane %v641, 1
    %v643 = vadd.f32 %v641, %v642
    %v644 = vsel %vm139, %v628, 0.0
    %v645 = vsel %vm635, %v629, 0.0
    %v646 = vadd.f32 %v644, %v645
    %v647 = vrot.slane %v646, 4
    %v648 = vadd.f32 %v646, %v647
    %v649 = vrot.slane %v648, 2
    %v650 = vadd.f32 %v648, %v649
    %v651 = vrot.slane %v650, 1
    %v652 = vadd.f32 %v650, %v651
    %v653 = vmul.f32 %v643, 0.071428575
    %v654 = vmul.f32 %v652, 0.071428575
    %v655 = vmax.f32 %v653, 0.0
    %v656 = vmax.f32 %v654, 0.0
    %vm659 = vcmask 1041409
    %v660 = vsel %vm659, %v656, %v655
    %vm662 = vcmask 25600
    %663 = vst.msk [vmem:[#allocation2] sm:$0x3] %vm662, %v660
    // Predicated region
    $region30: #{tpu_custom_call.1} parent=1 // pred_check
      _
    $region31: #{tpu_custom_call.1} parent=1 // pred_check_branch
      %665 = sbr.rel (0) target = $region33
    $region32: #{tpu_custom_call.1} parent=1 // pred_region
      %667 = vsyncadd [#allocation3], 0
      %s669 = sshll.u32 [#allocation2], 4
      %s670 = int_to_ptr.vmem [resolvable:$true] %s669
      %s671 = sshll.u32 %s7, 4
      %s672 = int_to_ptr.hbm [resolvable:$true] %s671
      %674 = dma.vmem_to_hbm [thread:$0]  %s670, 32, %s672, [#allocation3]
    $region33: #{tpu_custom_call.1} parent=1 // pred_fallthru
      _
    // Predicated region
    $region34: #{tpu_custom_call.1} parent=1 // pred_check
      _
    $region35: #{tpu_custom_call.1} parent=1 // pred_check_branch
      %676 = sbr.rel (0) target = $region37
    $region36: #{tpu_custom_call.1} parent=1 // pred_region
      %678 = dma.done [#allocation3], 32
    $region37: #{tpu_custom_call.1} parent=1 // pred_fallthru
      _
    %679 = vsyncpa [#allocation3], 1

</llo_original>
